<compile_context>
chip_gen: v7x
topology: tpu7x:2x2x1
jax: 0.10.0
libtpu: 0.0.40
codegen_flags: <defaults>
</compile_context>

<pallas_src>
import jax
import jax.numpy as jnp
from jax.experimental import pallas as pl
from jax.experimental.pallas import tpu as pltpu

_LANE = 512          # block lane width (multiple of 128)
_BLOCK_ROWS = 1024   # block sublane rows (multiple of 8): 1024x512 f32 = 2 MiB/block.
                     # 1 input + 1 output, double-buffered = 8 MiB -> fits every
                     # generation's default scoped VMEM (16 MiB v5e, 32 MiB v6e/v7x).


# ----------------------------------------------------------------------------------
# 1. Standalone elementwise HSwish:  x * relu6(x + 3) / 6
# ----------------------------------------------------------------------------------
def _hswish_kernel(x_ref, o_ref):
    x = x_ref[...]
    o_ref[...] = (x * (jnp.clip(x + 3.0, 0.0, 6.0) / 6.0)).astype(o_ref.dtype)


def _hswish_ref(x):
    # Same op order as the PyTorch HSwish module: x * (relu6(x + 3) / 6)
    return x * (jnp.clip(x + 3.0, 0.0, 6.0) / 6.0)


def hswish(x: jax.Array) -> jax.Array:
    """Elementwise HSwish over an any-shape tensor via Pallas (HBM-roofline tiling)."""
    total = x.size
    if total == 0:
        return x

    # dtype-aware sublane alignment: 8 rows for f32, 16 for bf16, 32 for int8/fp8.
    sub = max(8, 32 // x.dtype.itemsize)

    # Pick a lane width in {512, 256, 128} such that rows = total/lane is sub-aligned.
    lane = _LANE
    while lane > 128 and total % (sub * lane) != 0:
        lane //= 2
    if total % (sub * lane) != 0:
        # Tiny / non-tile-aligned tensor: plain XLA elementwise already costs exactly
        # one HBM read + one write (same as the kernel) — no pad+slice round-trip.
        return _hswish_ref(x)

    rows = total // lane                 # multiple of `sub`
    tr = min(_BLOCK_ROWS, rows)          # multiple of 8 and <= rows -> always legal
    x2 = x.reshape(rows, lane)           # contiguous row-major reshape: free

    out = pl.pallas_call(
        _hswish_kernel,
        out_shape=jax.ShapeDtypeStruct((rows, lane), x.dtype),
        grid=(pl.cdiv(rows, tr),),
        in_specs=[pl.BlockSpec((tr, lane), lambda i: (i, 0))],
        out_specs=pl.BlockSpec((tr, lane), lambda i: (i, 0)),
        input_output_aliases={0: 0},     # in-place activation: reuse the buffer
        compiler_params=pltpu.CompilerParams(
            dimension_semantics=("parallel",)),  # lets v7x shard blocks over both TCs
    )(x2)
    return out.reshape(x.shape)


# ----------------------------------------------------------------------------------
# 2. Fused avgpool head:  ReLU6 -> AdaptiveAvgPool2d(1) -> HSwish   ((B,C,H,W)->(B,C))
# ----------------------------------------------------------------------------------
def _avgpool_head_kernel(x_ref, o_ref):
    r = jnp.clip(x_ref[...].astype(jnp.float32), 0.0, 6.0)   # ReLU6
    m = jnp.mean(r, axis=-1, keepdims=True)                  # global spatial mean
    o_ref[...] = (m * (jnp.clip(m + 3.0, 0.0, 6.0) / 6.0)).astype(o_ref.dtype)


def avgpool_head(x: jax.Array) -> jax.Array:
    B, C, H, W = x.shape
    rows, cols = B * C, H * W
    x2 = x.reshape(rows, cols)
    tr = rows if rows <= 256 else 256     # full dim (always legal) or multiple of 8
    out = pl.pallas_call(
        _avgpool_head_kernel,
        out_shape=jax.ShapeDtypeStruct((rows, 1), x.dtype),
        grid=(pl.cdiv(rows, tr),),
        in_specs=[pl.BlockSpec((tr, cols), lambda i: (i, 0))],
        out_specs=pl.BlockSpec((tr, 1), lambda i: (i, 0)),
        compiler_params=pltpu.CompilerParams(
            dimension_semantics=("parallel",)),
    )(x2)
    return out.reshape(B, C)


# ----------------------------------------------------------------------------------
# 3. Fused SwishLinear:  Linear -> BatchNorm1d (eval) -> HSwish
# ----------------------------------------------------------------------------------
def _swish_linear_kernel(x_ref, w_ref, b_ref, s_ref, t_ref, o_ref):
    # z = (x @ W + b) * scale + shift   (BN folded),  then HSwish(z) in the epilogue.
    acc = jnp.dot(x_ref[...], w_ref[...], preferred_element_type=jnp.float32)
    z = (acc + b_ref[...]) * s_ref[...] + t_ref[...]
    o_ref[...] = (z * (jnp.clip(z + 3.0, 0.0, 6.0) / 6.0)).astype(o_ref.dtype)


def swish_linear(x, w, b, gamma, beta, running_mean, running_var, eps=1e-5):
    """HSwish(BatchNorm1d(x @ w + b)) in one Pallas kernel.

    x: (B, C1); w: (C1, C2); b/gamma/beta/running_mean/running_var: (C2,).
    BatchNorm1d uses inference (running) statistics, folded to scale/shift.
    """
    B, K = x.shape
    Kw, N = w.shape
    assert K == Kw
    inv = gamma / jnp.sqrt(running_var + eps)
    scale = inv.reshape(1, N).astype(jnp.float32)
    shift = (beta - running_mean * inv).reshape(1, N).astype(jnp.float32)
    bias = b.reshape(1, N).astype(jnp.float32)

    tn = N if N <= 256 else 256          # tile over output features (lane axis)
    return pl.pallas_call(
        _swish_linear_kernel,
        out_shape=jax.ShapeDtypeStruct((B, N), x.dtype),
        grid=(pl.cdiv(N, tn),),
        in_specs=[
            pl.BlockSpec((B, K), lambda j: (0, 0)),   # activations (whole small batch)
            pl.BlockSpec((K, tn), lambda j: (0, j)),  # weight column tile
            pl.BlockSpec((1, tn), lambda j: (0, j)),  # bias
            pl.BlockSpec((1, tn), lambda j: (0, j)),  # BN scale
            pl.BlockSpec((1, tn), lambda j: (0, j)),  # BN shift
        ],
        out_specs=pl.BlockSpec((B, tn), lambda j: (0, j)),
        compiler_params=pltpu.CompilerParams(
            dimension_semantics=("parallel",)),
    )(x, w, bias, scale, shift)


# ----------------------------------------------------------------------------------
if __name__ == "__main__":
    key = jax.random.PRNGKey(0)
    ks = jax.random.split(key, 8)

    # Small shapes consistent with the MicroNet tail:
    #   backbone feature map -> fused avgpool head -> fused SwishLinear classifier.
    B, C, H, W = 2, 32, 16, 16
    HIDDEN, NUM_CLASSES = 64, 16

    x = jax.random.normal(ks[0], (B, C, H, W), jnp.float32) * 4.0

    # --- 1. standalone HSwish (tile-aligned path + odd-size fallback path) --------
    y = hswish(x)
    jax.block_until_ready(y)
    assert y.shape == x.shape and y.dtype == x.dtype
    assert jnp.allclose(y, _hswish_ref(x), atol=1e-5, rtol=1e-5)

    x_odd = jax.random.normal(ks[1], (3, 5, 7), jnp.float32)
    assert jnp.allclose(hswish(x_odd), _hswish_ref(x_odd), atol=1e-5, rtol=1e-5)

    # --- 2. fused avgpool head: ReLU6 -> global avg pool -> HSwish ---------------
    pooled = avgpool_head(x)
    jax.block_until_ready(pooled)
    pooled_ref = _hswish_ref(jnp.mean(jnp.clip(x, 0.0, 6.0), axis=(2, 3)))
    assert pooled.shape == (B, C)
    assert jnp.allclose(pooled, pooled_ref, atol=1e-5, rtol=1e-5)

    # --- 3. fused SwishLinear classifier (Dropout is identity at inference) ------
    def make_params(k, c_in, c_out):
        kw, kb, kg, kbe, km, kv = jax.random.split(k, 6)
        return dict(
            w=jax.random.normal(kw, (c_in, c_out), jnp.float32) / jnp.sqrt(float(c_in)),
            b=0.1 * jax.random.normal(kb, (c_out,), jnp.float32),
            gamma=1.0 + 0.1 * jax.random.normal(kg, (c_out,), jnp.float32),
            beta=0.1 * jax.random.normal(kbe, (c_out,), jnp.float32),
            mean=0.1 * jax.random.normal(km, (c_out,), jnp.float32),
            var=jax.random.uniform(kv, (c_out,), jnp.float32, 0.5, 1.5),
        )

    p1 = make_params(ks[2], C, HIDDEN)
    p2 = make_params(ks[3], HIDDEN, NUM_CLASSES)

    def swish_linear_ref(xx, p, eps=1e-5):
        inv = p["gamma"] / jnp.sqrt(p["var"] + eps)
        z = (xx @ p["w"] + p["b"]) * inv + (p["beta"] - p["mean"] * inv)
        return _hswish_ref(z)

    h = swish_linear(pooled, p1["w"], p1["b"], p1["gamma"], p1["beta"], p1["mean"], p1["var"])
    logits = swish_linear(h, p2["w"], p2["b"], p2["gamma"], p2["beta"], p2["mean"], p2["var"])
    jax.block_until_ready(logits)

    logits_ref = swish_linear_ref(swish_linear_ref(pooled_ref, p1), p2)
    assert logits.shape == (B, NUM_CLASSES)
    assert jnp.allclose(logits, logits_ref, atol=1e-4, rtol=1e-4)

    print("KERNEL_OK")
</pallas_src>

<mosaic_0001>
module attributes {stable_mosaic.version = 11 : i64} {
  func.func @_hswish_kernel(%arg0: i32, %arg1: memref<32x512xf32, #tpu.memory_space<vmem>>, %arg2: memref<32x512xf32, #tpu.memory_space<vmem>>) attributes {dimension_semantics = [#tpu.dimension_semantics<parallel>], iteration_bounds = array<i64: 1>, scalar_prefetch = 0 : i64, scratch_operands = 0 : i64, tpu.core_type = #tpu.core_type<tc>, window_params = [{transform_indices = @transform_0, window_bounds = array<i64: 32, 512>}, {transform_indices = @transform_1, window_bounds = array<i64: 32, 512>}]} {
    %c0 = arith.constant 0 : index
    %c0_0 = arith.constant 0 : index
    %0 = vector.load %arg1[%c0, %c0_0] : memref<32x512xf32, #tpu.memory_space<vmem>>, vector<32x512xf32>
    %cst = arith.constant 3.000000e+00 : f32
    %1 = vector.broadcast %cst : f32 to vector<32x512xf32>
    %2 = arith.addf %0, %1 : vector<32x512xf32>
    %cst_1 = arith.constant 0.000000e+00 : f32
    %cst_2 = arith.constant 6.000000e+00 : f32
    %3 = vector.broadcast %cst_1 : f32 to vector<32x512xf32>
    %4 = arith.maximumf %3, %2 : vector<32x512xf32>
    %5 = vector.broadcast %cst_2 : f32 to vector<32x512xf32>
    %6 = arith.minimumf %5, %4 : vector<32x512xf32>
    %cst_3 = arith.constant 6.000000e+00 : f32
    %7 = vector.broadcast %cst_3 : f32 to vector<32x512xf32>
    %8 = arith.divf %6, %7 : vector<32x512xf32>
    %9 = arith.mulf %0, %8 : vector<32x512xf32>
    %c0_4 = arith.constant 0 : index
    %c0_5 = arith.constant 0 : index
    %10 = vector.load %arg2[%c0_4, %c0_5] : memref<32x512xf32, #tpu.memory_space<vmem>>, vector<32x512xf32>
    tpu.vector_store %arg2[%c0_4, %c0_5], %9 {strides = array<i32>} : memref<32x512xf32, #tpu.memory_space<vmem>>, vector<32x512xf32>,
    return
  }
  func.func @transform_0(%arg0: i32) -> (i32, i32) {
    %c0_i32 = arith.constant 0 : i32
    %c0_i32_0 = arith.constant 0 : i32
    return %arg0, %c0_i32 : i32, i32
  }
  func.func @transform_1(%arg0: i32) -> (i32, i32) {
    %c0_i32 = arith.constant 0 : i32
    %c0_i32_0 = arith.constant 0 : i32
    return %arg0, %c0_i32 : i32, i32
  }
}

</mosaic_0001>

<llo_original>
// kernel: tpu_custom_call.1
$region0: #{tpu_custom_call.1}
  #allocation0 [shape = 'u32[]', space=smem, size = 0x4, offset = 0x4, fixed_abs, tag = 'smem constant byte address 0x4 - core index']
  #allocation1 [shape = 'u32[144,128]{1,0:T(1,128)}', space=vmem, size = 0x12000, scoped, tag = 'internal scratch']
  %s0 = inlined_call_operand.hbm [shape: f32[32,512], index: 0, kind: input, shape index: {}, may-alias: {0,1}]
  %s1 = inlined_call_operand.hbm [shape: f32[32,512], index: 1, kind: output, shape index: {}, may-alias: {0,1}]
  %s2 = sld [smem:[#allocation0]]
  $region18: #{tpu_custom_call.1} parent=0
    _
  %s4 = ssub.s32 1, %s2
  %s5 = scalar_select 0, %s4, %s2
  $region1: #{tpu_custom_call.1} parent=0
    #allocation2 [shape = 'u8[65536]{0}', space=vmem, size = 0x10000, scoped, tag = 'input window, operand 0, single buffered']
    #allocation3 [shape = 's32[1]{0}', space=sflag, size = 0x4, scoped, tag = 'scoped memory for tpu_custom_call.1']
    #allocation4 [shape = 's32[1]{0}', space=sflag, size = 0x4, scoped, tag = 'scoped memory for tpu_custom_call.1']
    #allocation5 [shape = 'u8[65536]{0}', space=vmem, size = 0x10000, scoped, tag = 'output window, operand 0, single buffered']
    %6 = vsyncpa [#allocation3], 0
    %7 = vsyncpa [#allocation4], 0
    // Predicated region
    $region2: #{tpu_custom_call.1} parent=1 // pred_check
      _
    $region3: #{tpu_custom_call.1} parent=1 // pred_check_branch
      %9 = sbr.rel (0) target = $region5
    $region4: #{tpu_custom_call.1} parent=1 // pred_region
      %s11 = ssub.s32 2048, 2048
      %12 = vsyncadd [#allocation3], %s11
      %s13 = sshll.u32 [#allocation2], 4
      %s14 = int_to_ptr.vmem [resolvable:$true] %s13
      %19 = dma.hbm_to_vmem [thread:$0]  %s0, 2048, %s14, [#allocation3], 512, 512, 32
    $region5: #{tpu_custom_call.1} parent=1 // pred_fallthru
      _
    // Predicated region
    $region6: #{tpu_custom_call.1} parent=1 // pred_check
      _
    $region7: #{tpu_custom_call.1} parent=1 // pred_check_branch
      %21 = sbr.rel (0) target = $region9
    $region8: #{tpu_custom_call.1} parent=1 // pred_region
      %22 = dma.done [#allocation3], 2048
    $region9: #{tpu_custom_call.1} parent=1 // pred_fallthru
      _
    %v23 = vld [vmem:[#allocation2] sm:$0xff]
    %v24 = vld [vmem:[#allocation2 + $0x8] sm:$0xff]
    %v25 = vld [vmem:[#allocation2 + $0x10] sm:$0xff]
    %v26 = vld [vmem:[#allocation2 + $0x18] sm:$0xff]
    %v27 = vld [vmem:[#allocation2 + $0x20] sm:$0xff]
    %v28 = vld [vmem:[#allocation2 + $0x28] sm:$0xff]
    %v29 = vld [vmem:[#allocation2 + $0x30] sm:$0xff]
    %v30 = vld [vmem:[#allocation2 + $0x38] sm:$0xff]
    %v31 = vld [vmem:[#allocation2 + $0x40] sm:$0xff]
    %v32 = vld [vmem:[#allocation2 + $0x48] sm:$0xff]
    %v33 = vld [vmem:[#allocation2 + $0x50] sm:$0xff]
    %v34 = vld [vmem:[#allocation2 + $0x58] sm:$0xff]
    %v35 = vld [vmem:[#allocation2 + $0x60] sm:$0xff]
    %v36 = vld [vmem:[#allocation2 + $0x68] sm:$0xff]
    %v37 = vld [vmem:[#allocation2 + $0x70] sm:$0xff]
    %v38 = vld [vmem:[#allocation2 + $0x78] sm:$0xff]
    %v39 = vadd.f32 %v23, 3.0
    %v40 = vadd.f32 %v24, 3.0
    %v41 = vadd.f32 %v25, 3.0
    %v42 = vadd.f32 %v26, 3.0
    %v43 = vadd.f32 %v27, 3.0
    %v44 = vadd.f32 %v28, 3.0
    %v45 = vadd.f32 %v29, 3.0
    %v46 = vadd.f32 %v30, 3.0
    %v47 = vadd.f32 %v31, 3.0
    %v48 = vadd.f32 %v32, 3.0
    %v49 = vadd.f32 %v33, 3.0
    %v50 = vadd.f32 %v34, 3.0
    %v51 = vadd.f32 %v35, 3.0
    %v52 = vadd.f32 %v36, 3.0
    %v53 = vadd.f32 %v37, 3.0
    %v54 = vadd.f32 %v38, 3.0
    %v55 = vmax.f32 %v39, 0.0
    %v56 = vmax.f32 %v40, 0.0
    %v57 = vmax.f32 %v41, 0.0
    %v58 = vmax.f32 %v42, 0.0
    %v59 = vmax.f32 %v43, 0.0
    %v60 = vmax.f32 %v44, 0.0
    %v61 = vmax.f32 %v45, 0.0
    %v62 = vmax.f32 %v46, 0.0
    %v63 = vmax.f32 %v47, 0.0
    %v64 = vmax.f32 %v48, 0.0
    %v65 = vmax.f32 %v49, 0.0
    %v66 = vmax.f32 %v50, 0.0
    %v67 = vmax.f32 %v51, 0.0
    %v68 = vmax.f32 %v52, 0.0
    %v69 = vmax.f32 %v53, 0.0
    %v70 = vmax.f32 %v54, 0.0
    %v71 = vmin.f32 %v55, 6.0
    %v72 = vmin.f32 %v56, 6.0
    %v73 = vmin.f32 %v57, 6.0
    %v74 = vmin.f32 %v58, 6.0
    %v75 = vmin.f32 %v59, 6.0
    %v76 = vmin.f32 %v60, 6.0
    %v77 = vmin.f32 %v61, 6.0
    %v78 = vmin.f32 %v62, 6.0
    %v79 = vmin.f32 %v63, 6.0
    %v80 = vmin.f32 %v64, 6.0
    %v81 = vmin.f32 %v65, 6.0
    %v82 = vmin.f32 %v66, 6.0
    %v83 = vmin.f32 %v67, 6.0
    %v84 = vmin.f32 %v68, 6.0
    %v85 = vmin.f32 %v69, 6.0
    %v86 = vmin.f32 %v70, 6.0
    %v87 = vrcp.pop 6.0
    %v88 = vmul.f32 %v71, %v87
    %v89 = vmul.f32 %v72, %v87
    %v90 = vmul.f32 %v73, %v87
    %v91 = vmul.f32 %v74, %v87
    %v92 = vmul.f32 %v75, %v87
    %v93 = vmul.f32 %v76, %v87
    %v94 = vmul.f32 %v77, %v87
    %v95 = vmul.f32 %v78, %v87
    %v96 = vmul.f32 %v79, %v87
    %v97 = vmul.f32 %v80, %v87
    %v98 = vmul.f32 %v81, %v87
    %v99 = vmul.f32 %v82, %v87
    %v100 = vmul.f32 %v83, %v87
    %v101 = vmul.f32 %v84, %v87
    %v102 = vmul.f32 %v85, %v87
    %v103 = vmul.f32 %v86, %v87
    %v104 = vmul.f32 %v23, %v88
    %v105 = vmul.f32 %v24, %v89
    %v106 = vmul.f32 %v25, %v90
    %v107 = vmul.f32 %v26, %v91
    %v108 = vmul.f32 %v27, %v92
    %v109 = vmul.f32 %v28, %v93
    %v110 = vmul.f32 %v29, %v94
    %v111 = vmul.f32 %v30, %v95
    %v112 = vmul.f32 %v31, %v96
    %v113 = vmul.f32 %v32, %v97
    %v114 = vmul.f32 %v33, %v98
    %v115 = vmul.f32 %v34, %v99
    %v116 = vmul.f32 %v35, %v100
    %v117 = vmul.f32 %v36, %v101
    %v118 = vmul.f32 %v37, %v102
    %v119 = vmul.f32 %v38, %v103
    %120 = vst [vmem:[#allocation5] sm:$0xff] %v104
    %121 = vst [vmem:[#allocation5 + $0x8] sm:$0xff] %v105
    %122 = vst [vmem:[#allocation5 + $0x10] sm:$0xff] %v106
    %123 = vst [vmem:[#allocation5 + $0x18] sm:$0xff] %v107
    %124 = vst [vmem:[#allocation5 + $0x20] sm:$0xff] %v108
    %125 = vst [vmem:[#allocation5 + $0x28] sm:$0xff] %v109
    %126 = vst [vmem:[#allocation5 + $0x30] sm:$0xff] %v110
    %127 = vst [vmem:[#allocation5 + $0x38] sm:$0xff] %v111
    %128 = vst [vmem:[#allocation5 + $0x40] sm:$0xff] %v112
    %129 = vst [vmem:[#allocation5 + $0x48] sm:$0xff] %v113
    %130 = vst [vmem:[#allocation5 + $0x50] sm:$0xff] %v114
    %131 = vst [vmem:[#allocation5 + $0x58] sm:$0xff] %v115
    %132 = vst [vmem:[#allocation5 + $0x60] sm:$0xff] %v116
    %133 = vst [vmem:[#allocation5 + $0x68] sm:$0xff] %v117
    %134 = vst [vmem:[#allocation5 + $0x70] sm:$0xff] %v118
    %135 = vst [vmem:[#allocation5 + $0x78] sm:$0xff] %v119
    // Predicated region
    $region10: #{tpu_custom_call.1} parent=1 // pred_check
      _
    $region11: #{tpu_custom_call.1} parent=1 // pred_check_branch
      %137 = sbr.rel (0) target = $region13
    $region12: #{tpu_custom_call.1} parent=1 // pred_region
      %s139 = ssub.s32 2048, 2048
      %140 = vsyncadd [#allocation4], %s139
      %s141 = sshll.u32 [#allocation5], 4
      %s142 = int_to_ptr.vmem [resolvable:$true] %s141
      %147 = dma.vmem_to_hbm [thread:$0]  %s142, 2048, %s1, [#allocation4], 512, 512, 32
    $region13: #{tpu_custom_call.1} parent=1 // pred_fallthru
      _
    // Predicated region
    $region14: #{tpu_custom_call.1} parent=1 // pred_check
      _
    $region15: #{tpu_custom_call.1} parent=1 // pred_check_branch
      %149 = sbr.rel (0) target = $region17
    $region16: #{tpu_custom_call.1} parent=1 // pred_region
      %150 = dma.done [#allocation4], 2048
    $region17: #{tpu_custom_call.1} parent=1 // pred_fallthru
      _
    %151 = vsyncpa [#allocation3], 1
    %152 = vsyncpa [#allocation4], 1

</llo_original>
